<compile_context>
chip_gen: v7x
topology: tpu7x:2x2x1
jax: 0.10.0
libtpu: 0.0.40
codegen_flags: <defaults>
</compile_context>

<pallas_src>
import jax
import jax.numpy as jnp
from jax.experimental import pallas as pl
from jax.experimental.pallas import tpu as pltpu


def _round_up(x, m):
    return ((x + m - 1) // m) * m


def _make_pinn_kernel(num_layers, in_dim, compute_dtype):
    """kernel(xt_ref, w0, b0, ..., wL, bL, out_ref); activations are (feat, tile)."""
    use_vpu_first = in_dim <= 4  # tiny contraction: do it on the VPU

    def kernel(xt_ref, *refs):
        out_ref = refs[-1]
        wb = refs[:-1]

        h = xt_ref[...]                                  # (in_dim, tile)
        for i in range(num_layers):
            w = wb[2 * i][...]                           # (out_i, in_i)
            b = wb[2 * i + 1][...]                       # (out_i, 1) f32
            last = i == num_layers - 1

            if i == 0 and use_vpu_first:
                # K<=4 contraction as broadcast multiply-adds (f32 accum),
                # avoiding one MXU round trip on the serialized layer chain.
                acc = (w[:, 0:1].astype(jnp.float32)
                       * h[0:1, :].astype(jnp.float32))
                for k in range(1, in_dim):
                    acc = acc + (w[:, k:k + 1].astype(jnp.float32)
                                 * h[k:k + 1, :].astype(jnp.float32))
            else:
                # MXU matmul with f32 accumulation.
                acc = jnp.dot(w, h, preferred_element_type=jnp.float32)

            if last:
                h = acc + b                              # final layer in f32
            elif compute_dtype is not None:
                # bf16 hidden activations: bias add + tanh in bf16 halves
                # VPU/EUP vreg work and intermediate traffic (v6e/v7x).
                h = jnp.tanh(acc.astype(compute_dtype)
                             + b.astype(compute_dtype))
            else:
                h = jnp.tanh(acc + b)                    # all-f32 path (v5e)

        out_ref[...] = h.astype(out_ref.dtype)           # (out_dim, tile), lane-dense

    return kernel


def pinn_forward(x, t, weights, biases, *, tile_n=8192, compute_dtype=None):
    """Fused Pallas forward of the PINN MLP.

    x: (N, dx), t: (N, dt)
    weights[i]: (out_i, in_i)  (PyTorch nn.Linear.weight layout)
    biases[i]:  (out_i, 1)
    Returns (N, out_dim) float32.
    """
    N = x.shape[0]
    num_layers = len(weights)
    out_dim = weights[-1].shape[0]
    in_dim = x.shape[1] + t.shape[1]

    # --- batch tile selection --------------------------------------------
    tile_n = max(128, (tile_n // 128) * 128)             # lane-dense multiple of 128
    if N <= 2 * tile_n:
        # >=2 grid steps for mid-size N (keeps both v7x TensorCores busy)
        # while tiny N still gets a single lane-dense 128-wide block.
        tile = min(tile_n, max(128, _round_up(-(-N // 2), 128)))
    else:
        tile = tile_n
    n_pad = _round_up(N, tile)

    # --- build the (in_dim, N) slab directly (no real transpose) ----------
    # x.T / t.T are free (degenerate) transposes for 1-wide feature dims;
    # padding (if any) touches only the tiny (in_dim, n_pad) slab. Padded
    # columns flow through tanh(b) garbage and are sliced off at the end.
    act_dtype = jnp.float32 if compute_dtype is None else compute_dtype
    xt_t = jnp.concatenate([x.T, t.T], axis=0).astype(act_dtype)
    if n_pad != N:
        xt_t = jnp.pad(xt_t, ((0, 0), (0, n_pad - N)))

    args = [xt_t]
    in_specs = [pl.BlockSpec((in_dim, tile), lambda i: (0, i))]
    for w, b in zip(weights, biases):
        args.append(w if compute_dtype is None else w.astype(compute_dtype))
        args.append(b.astype(jnp.float32))
        # Constant block index -> weights/biases stay resident across steps.
        in_specs.append(pl.BlockSpec(w.shape, lambda i: (0, 0)))
        in_specs.append(pl.BlockSpec(b.shape, lambda i: (0, 0)))

    # Advisory cost hint for XLA's scheduler around the custom call.
    w_elems = sum(int(w.size) for w in weights)
    hidden_units = sum(int(w.shape[0]) for w in weights[:-1])
    itemsize = jnp.dtype(act_dtype).itemsize
    param_bytes = sum(int(w.size + b.size) * 4 for w, b in zip(weights, biases))
    cost = pl.CostEstimate(
        flops=2 * w_elems * n_pad,
        transcendentals=hidden_units * n_pad,
        bytes_accessed=itemsize * in_dim * n_pad + 4 * out_dim * n_pad + param_bytes,
    )

    out_t = pl.pallas_call(
        _make_pinn_kernel(num_layers, in_dim, compute_dtype),
        out_shape=jax.ShapeDtypeStruct((out_dim, n_pad), jnp.float32),
        grid=(n_pad // tile,),
        in_specs=in_specs,
        out_specs=pl.BlockSpec((out_dim, tile), lambda i: (0, i)),
        compiler_params=pltpu.CompilerParams(
            dimension_semantics=("parallel",)
        ),
        cost_estimate=cost,
    )(*args)

    return out_t[:, :N].T                                # (N, out_dim)


def init_params(layers, key):
    """Deterministic init matching nn.Linear (weight (out, in), bias (out, 1))."""
    weights, biases = [], []
    for i in range(len(layers) - 1):
        key, kw, kb = jax.random.split(key, 3)
        bound = 1.0 / float(layers[i]) ** 0.5
        w = jax.random.uniform(
            kw, (layers[i + 1], layers[i]), jnp.float32, -bound, bound
        )
        b = jax.random.uniform(
            kb, (layers[i + 1], 1), jnp.float32, -bound, bound
        )
        weights.append(w)
        biases.append(b)
    return weights, biases


def pinn_forward_ref(x, t, weights, biases):
    """Pure-JAX reference mirroring the PyTorch forward exactly."""
    h = jnp.concatenate([x, t], axis=1)
    for i, (w, b) in enumerate(zip(weights, biases)):
        h = h @ w.T + b.T
        if i < len(weights) - 1:
            h = jnp.tanh(h)
    return h


if __name__ == "__main__":
    # layers = [dx + dt, hidden, hidden, hidden, 1]
    layers = [2, 32, 32, 32, 1]

    key = jax.random.PRNGKey(0)
    key, kx, kt = jax.random.split(key, 3)
    weights, biases = init_params(layers, key)

    # --- small batch: single 128-wide lane-dense block ---
    N = 16
    x = jax.random.normal(kx, (N, 1), jnp.float32)
    t = jax.random.normal(kt, (N, 1), jnp.float32)

    out = jax.block_until_ready(pinn_forward(x, t, weights, biases))
    ref = pinn_forward_ref(x, t, weights, biases)
    assert out.shape == (N, 1)
    assert jnp.allclose(out, ref, atol=1e-5, rtol=1e-5), "f32 mismatch vs reference"

    # --- non-multiple batch: 2 grid steps (v7x dual-TC path) + padding ---
    N2 = 300
    key, kx2, kt2 = jax.random.split(key, 3)
    x2 = jax.random.normal(kx2, (N2, 1), jnp.float32)
    t2 = jax.random.normal(kt2, (N2, 1), jnp.float32)
    out2 = jax.block_until_ready(pinn_forward(x2, t2, weights, biases))
    ref2 = pinn_forward_ref(x2, t2, weights, biases)
    assert out2.shape == (N2, 1)
    assert jnp.allclose(out2, ref2, atol=1e-5, rtol=1e-5), "padded mismatch vs reference"

    # --- bf16 activations (f32 MXU accumulation, f32 final layer) ---
    out_bf16 = jax.block_until_ready(
        pinn_forward(x, t, weights, biases, compute_dtype=jnp.bfloat16)
    )
    assert jnp.allclose(out_bf16, ref, atol=5e-2, rtol=5e-2), "bf16 mismatch vs reference"

    print("KERNEL_OK")
</pallas_src>

<mosaic_0001>
module attributes {stable_mosaic.version = 11 : i64} {
  func.func @kernel(%arg0: i32, %arg1: memref<2x128xf32, #tpu.memory_space<vmem>>, %arg2: memref<32x2xf32, #tpu.memory_space<vmem>>, %arg3: memref<32x1xf32, #tpu.memory_space<vmem>>, %arg4: memref<32x32xf32, #tpu.memory_space<vmem>>, %arg5: memref<32x1xf32, #tpu.memory_space<vmem>>, %arg6: memref<32x32xf32, #tpu.memory_space<vmem>>, %arg7: memref<32x1xf32, #tpu.memory_space<vmem>>, %arg8: memref<1x32xf32, #tpu.memory_space<vmem>>, %arg9: memref<1x1xf32, #tpu.memory_space<vmem>>, %arg10: memref<1x128xf32, #tpu.memory_space<vmem>>) attributes {dimension_semantics = [#tpu.dimension_semantics<parallel>], iteration_bounds = array<i64: 1>, scalar_prefetch = 0 : i64, scratch_operands = 0 : i64, tpu.core_type = #tpu.core_type<tc>, window_params = [{transform_indices = @transform_0, window_bounds = array<i64: 2, 128>}, {pipeline_mode = #tpu.pipeline_mode<synchronous>, transform_indices = @transform_1, window_bounds = array<i64: 32, 2>}, {pipeline_mode = #tpu.pipeline_mode<synchronous>, transform_indices = @transform_2, window_bounds = array<i64: 32, 1>}, {pipeline_mode = #tpu.pipeline_mode<synchronous>, transform_indices = @transform_3, window_bounds = array<i64: 32, 32>}, {pipeline_mode = #tpu.pipeline_mode<synchronous>, transform_indices = @transform_4, window_bounds = array<i64: 32, 1>}, {pipeline_mode = #tpu.pipeline_mode<synchronous>, transform_indices = @transform_5, window_bounds = array<i64: 32, 32>}, {pipeline_mode = #tpu.pipeline_mode<synchronous>, transform_indices = @transform_6, window_bounds = array<i64: 32, 1>}, {pipeline_mode = #tpu.pipeline_mode<synchronous>, transform_indices = @transform_7, window_bounds = array<i64: 1, 32>}, {pipeline_mode = #tpu.pipeline_mode<synchronous>, transform_indices = @transform_8, window_bounds = array<i64: 1, 1>}, {transform_indices = @transform_9, window_bounds = array<i64: 1, 128>}]} {
    %c0 = arith.constant 0 : index
    %c0_0 = arith.constant 0 : index
    %0 = vector.load %arg1[%c0, %c0_0] : memref<2x128xf32, #tpu.memory_space<vmem>>, vector<2x128xf32>
    %c0_1 = arith.constant 0 : index
    %c0_2 = arith.constant 0 : index
    %1 = vector.load %arg2[%c0_1, %c0_2] : memref<32x2xf32, #tpu.memory_space<vmem>>, vector<32x2xf32>
    %c0_3 = arith.constant 0 : index
    %c0_4 = arith.constant 0 : index
    %2 = vector.load %arg3[%c0_3, %c0_4] : memref<32x1xf32, #tpu.memory_space<vmem>>, vector<32x1xf32>
    %3 = vector.extract_strided_slice %1 {offsets = [0, 0], sizes = [32, 1], strides = [1, 1]} : vector<32x2xf32> to vector<32x1xf32>
    %4 = vector.extract_strided_slice %0 {offsets = [0, 0], sizes = [1, 128], strides = [1, 1]} : vector<2x128xf32> to vector<1x128xf32>
    %5 = vector.broadcast %3 : vector<32x1xf32> to vector<32x128xf32>
    %6 = vector.broadcast %4 : vector<1x128xf32> to vector<32x128xf32>
    %7 = arith.mulf %5, %6 : vector<32x128xf32>
    %8 = vector.extract_strided_slice %1 {offsets = [0, 1], sizes = [32, 1], strides = [1, 1]} : vector<32x2xf32> to vector<32x1xf32>
    %9 = vector.extract_strided_slice %0 {offsets = [1, 0], sizes = [1, 128], strides = [1, 1]} : vector<2x128xf32> to vector<1x128xf32>
    %10 = vector.broadcast %8 : vector<32x1xf32> to vector<32x128xf32>
    %11 = vector.broadcast %9 : vector<1x128xf32> to vector<32x128xf32>
    %12 = arith.mulf %10, %11 : vector<32x128xf32>
    %13 = arith.addf %7, %12 : vector<32x128xf32>
    %14 = vector.broadcast %2 : vector<32x1xf32> to vector<32x128xf32>
    %15 = arith.addf %13, %14 : vector<32x128xf32>
    %16 = math.tanh %15 : vector<32x128xf32>
    %c0_5 = arith.constant 0 : index
    %c0_6 = arith.constant 0 : index
    %17 = vector.load %arg4[%c0_5, %c0_6] : memref<32x32xf32, #tpu.memory_space<vmem>>, vector<32x32xf32>
    %c0_7 = arith.constant 0 : index
    %c0_8 = arith.constant 0 : index
    %18 = vector.load %arg5[%c0_7, %c0_8] : memref<32x1xf32, #tpu.memory_space<vmem>>, vector<32x1xf32>
    %cst = arith.constant dense<0.000000e+00> : vector<32x128xf32>
    %19 = tpu.matmul %17, %16, %cst {dimension_numbers = #tpu.dot_dimension_numbers<[1], [0], [0], [1], [0, 0, 1, 1], [], []>} : vector<32x32xf32>, vector<32x128xf32>, vector<32x128xf32> -> vector<32x128xf32>
    %20 = vector.broadcast %18 : vector<32x1xf32> to vector<32x128xf32>
    %21 = arith.addf %19, %20 : vector<32x128xf32>
    %22 = math.tanh %21 : vector<32x128xf32>
    %c0_9 = arith.constant 0 : index
    %c0_10 = arith.constant 0 : index
    %23 = vector.load %arg6[%c0_9, %c0_10] : memref<32x32xf32, #tpu.memory_space<vmem>>, vector<32x32xf32>
    %c0_11 = arith.constant 0 : index
    %c0_12 = arith.constant 0 : index
    %24 = vector.load %arg7[%c0_11, %c0_12] : memref<32x1xf32, #tpu.memory_space<vmem>>, vector<32x1xf32>
    %cst_13 = arith.constant dense<0.000000e+00> : vector<32x128xf32>
    %25 = tpu.matmul %23, %22, %cst_13 {dimension_numbers = #tpu.dot_dimension_numbers<[1], [0], [0], [1], [0, 0, 1, 1], [], []>} : vector<32x32xf32>, vector<32x128xf32>, vector<32x128xf32> -> vector<32x128xf32>
    %26 = vector.broadcast %24 : vector<32x1xf32> to vector<32x128xf32>
    %27 = arith.addf %25, %26 : vector<32x128xf32>
    %28 = math.tanh %27 : vector<32x128xf32>
    %c0_14 = arith.constant 0 : index
    %c0_15 = arith.constant 0 : index
    %29 = vector.load %arg8[%c0_14, %c0_15] : memref<1x32xf32, #tpu.memory_space<vmem>>, vector<1x32xf32>
    %c0_16 = arith.constant 0 : index
    %c0_17 = arith.constant 0 : index
    %30 = vector.load %arg9[%c0_16, %c0_17] : memref<1x1xf32, #tpu.memory_space<vmem>>, vector<1x1xf32>
    %cst_18 = arith.constant dense<0.000000e+00> : vector<1x128xf32>
    %31 = tpu.matmul %29, %28, %cst_18 {dimension_numbers = #tpu.dot_dimension_numbers<[1], [0], [0], [1], [0, 0, 1, 1], [], []>} : vector<1x32xf32>, vector<32x128xf32>, vector<1x128xf32> -> vector<1x128xf32>
    %32 = vector.broadcast %30 : vector<1x1xf32> to vector<1x128xf32>
    %33 = arith.addf %31, %32 : vector<1x128xf32>
    %c0_19 = arith.constant 0 : index
    %c0_20 = arith.constant 0 : index
    %34 = vector.load %arg10[%c0_19, %c0_20] : memref<1x128xf32, #tpu.memory_space<vmem>>, vector<1x128xf32>
    tpu.vector_store %arg10[%c0_19, %c0_20], %33 {strides = array<i32>} : memref<1x128xf32, #tpu.memory_space<vmem>>, vector<1x128xf32>,
    return
  }
  func.func @transform_0(%arg0: i32) -> (i32, i32) {
    %c0_i32 = arith.constant 0 : i32
    %c0_i32_0 = arith.constant 0 : i32
    return %c0_i32, %arg0 : i32, i32
  }
  func.func @transform_1(%arg0: i32) -> (i32, i32) {
    %c0_i32 = arith.constant 0 : i32
    %c0_i32_0 = arith.constant 0 : i32
    %c0_i32_1 = arith.constant 0 : i32
    return %c0_i32, %c0_i32_0 : i32, i32
  }
  func.func @transform_2(%arg0: i32) -> (i32, i32) {
    %c0_i32 = arith.constant 0 : i32
    %c0_i32_0 = arith.constant 0 : i32
    %c0_i32_1 = arith.constant 0 : i32
    return %c0_i32, %c0_i32_0 : i32, i32
  }
  func.func @transform_3(%arg0: i32) -> (i32, i32) {
    %c0_i32 = arith.constant 0 : i32
    %c0_i32_0 = arith.constant 0 : i32
    %c0_i32_1 = arith.constant 0 : i32
    return %c0_i32, %c0_i32_0 : i32, i32
  }
  func.func @transform_4(%arg0: i32) -> (i32, i32) {
    %c0_i32 = arith.constant 0 : i32
    %c0_i32_0 = arith.constant 0 : i32
    %c0_i32_1 = arith.constant 0 : i32
    return %c0_i32, %c0_i32_0 : i32, i32
  }
  func.func @transform_5(%arg0: i32) -> (i32, i32) {
    %c0_i32 = arith.constant 0 : i32
    %c0_i32_0 = arith.constant 0 : i32
    %c0_i32_1 = arith.constant 0 : i32
    return %c0_i32, %c0_i32_0 : i32, i32
  }
  func.func @transform_6(%arg0: i32) -> (i32, i32) {
    %c0_i32 = arith.constant 0 : i32
    %c0_i32_0 = arith.constant 0 : i32
    %c0_i32_1 = arith.constant 0 : i32
    return %c0_i32, %c0_i32_0 : i32, i32
  }
  func.func @transform_7(%arg0: i32) -> (i32, i32) {
    %c0_i32 = arith.constant 0 : i32
    %c0_i32_0 = arith.constant 0 : i32
    %c0_i32_1 = arith.constant 0 : i32
    return %c0_i32, %c0_i32_0 : i32, i32
  }
  func.func @transform_8(%arg0: i32) -> (i32, i32) {
    %c0_i32 = arith.constant 0 : i32
    %c0_i32_0 = arith.constant 0 : i32
    %c0_i32_1 = arith.constant 0 : i32
    return %c0_i32, %c0_i32_0 : i32, i32
  }
  func.func @transform_9(%arg0: i32) -> (i32, i32) {
    %c0_i32 = arith.constant 0 : i32
    %c0_i32_0 = arith.constant 0 : i32
    return %c0_i32, %arg0 : i32, i32
  }
}

</mosaic_0001>

<llo_original>
// kernel: tpu_custom_call.1
$region0: #{tpu_custom_call.1}
  #allocation0 [shape = 'u32[]', space=smem, size = 0x4, offset = 0x4, fixed_abs, tag = 'smem constant byte address 0x4 - core index']
  #allocation1 [shape = 'u32[144,128]{1,0:T(1,128)}', space=vmem, size = 0x12000, scoped, tag = 'internal scratch']
  #allocation2 [shape = 'f32[1,1]{1,0:T(1,128)S(1)}', space=vmem, size = 0x200, scoped, tag = 'scoped memory for tpu_custom_call.1']
  %s0 = inlined_call_operand.vmem [shape: f32[2,128], index: 0, kind: input, shape index: {}]
  %s1 = inlined_call_operand.vmem [shape: f32[32,2], index: 1, kind: input, shape index: {}]
  %s2 = inlined_call_operand.vmem [shape: f32[32,1], index: 2, kind: input, shape index: {}]
  %s3 = inlined_call_operand.vmem [shape: f32[32,32], index: 3, kind: input, shape index: {}]
  %s4 = inlined_call_operand.vmem [shape: f32[32,1], index: 4, kind: input, shape index: {}]
  %s5 = inlined_call_operand.vmem [shape: f32[32,32], index: 5, kind: input, shape index: {}]
  %s6 = inlined_call_operand.vmem [shape: f32[32,1], index: 6, kind: input, shape index: {}]
  %s7 = inlined_call_operand.vmem [shape: f32[1,32], index: 7, kind: input, shape index: {}]
  %s8 = inlined_call_operand.<no memory space> [shape: f32[1,1], index: 8, kind: input, shape index: {}]
  %s9 = inlined_call_operand.hbm [shape: f32[1,128], index: 9, kind: output, shape index: {}]
  %s10 = sld [smem:[#allocation0]]
  $region46: #{tpu_custom_call.1} parent=0
    _
  %s12 = ssub.s32 1, %s10
  %s13 = scalar_select 0, %s12, %s10
  %v14 = vstv %s8
  %15 = vst [vmem:[#allocation2] sm:$0x1] %v14
  $region1: #{tpu_custom_call.1} parent=0
    #allocation3 [shape = 'u8[512]{0}', space=vmem, size = 0x400, scoped, tag = 'output window, operand 0, single buffered']
    #allocation4 [shape = 's32[1]{0}', space=sflag, size = 0x4, scoped, tag = 'scoped memory for tpu_custom_call.1']
    %16 = vsyncpa [#allocation4], 0
    // Predicated region
    $region2: #{tpu_custom_call.1} parent=1 // pred_check
      _
    $region3: #{tpu_custom_call.1} parent=1 // pred_check_branch
      %18 = sbr.rel (0) target = $region5
    $region4: #{tpu_custom_call.1} parent=1 // pred_region
      _
    $region5: #{tpu_custom_call.1} parent=1 // pred_fallthru
      _
    // Predicated region
    $region6: #{tpu_custom_call.1} parent=1 // pred_check
      _
    $region7: #{tpu_custom_call.1} parent=1 // pred_check_branch
      %20 = sbr.rel (0) target = $region9
    $region8: #{tpu_custom_call.1} parent=1 // pred_region
      _
    $region9: #{tpu_custom_call.1} parent=1 // pred_fallthru
      _
    // Predicated region
    $region10: #{tpu_custom_call.1} parent=1 // pred_check
      _
    $region11: #{tpu_custom_call.1} parent=1 // pred_check_branch
      %22 = sbr.rel (0) target = $region13
    $region12: #{tpu_custom_call.1} parent=1 // pred_region
      _
    $region13: #{tpu_custom_call.1} parent=1 // pred_fallthru
      _
    // Predicated region
    $region14: #{tpu_custom_call.1} parent=1 // pred_check
      _
    $region15: #{tpu_custom_call.1} parent=1 // pred_check_branch
      %24 = sbr.rel (0) target = $region17
    $region16: #{tpu_custom_call.1} parent=1 // pred_region
      _
    $region17: #{tpu_custom_call.1} parent=1 // pred_fallthru
      _
    // Predicated region
    $region18: #{tpu_custom_call.1} parent=1 // pred_check
      _
    $region19: #{tpu_custom_call.1} parent=1 // pred_check_branch
      %26 = sbr.rel (0) target = $region21
    $region20: #{tpu_custom_call.1} parent=1 // pred_region
      _
    $region21: #{tpu_custom_call.1} parent=1 // pred_fallthru
      _
    // Predicated region
    $region22: #{tpu_custom_call.1} parent=1 // pred_check
      _
    $region23: #{tpu_custom_call.1} parent=1 // pred_check_branch
      %28 = sbr.rel (0) target = $region25
    $region24: #{tpu_custom_call.1} parent=1 // pred_region
      _
    $region25: #{tpu_custom_call.1} parent=1 // pred_fallthru
      _
    // Predicated region
    $region26: #{tpu_custom_call.1} parent=1 // pred_check
      _
    $region27: #{tpu_custom_call.1} parent=1 // pred_check_branch
      %30 = sbr.rel (0) target = $region29
    $region28: #{tpu_custom_call.1} parent=1 // pred_region
      _
    $region29: #{tpu_custom_call.1} parent=1 // pred_fallthru
      _
    // Predicated region
    $region30: #{tpu_custom_call.1} parent=1 // pred_check
      _
    $region31: #{tpu_custom_call.1} parent=1 // pred_check_branch
      %32 = sbr.rel (0) target = $region33
    $region32: #{tpu_custom_call.1} parent=1 // pred_region
      _
    $region33: #{tpu_custom_call.1} parent=1 // pred_fallthru
      _
    // Predicated region
    $region34: #{tpu_custom_call.1} parent=1 // pred_check
      _
    $region35: #{tpu_custom_call.1} parent=1 // pred_check_branch
      %34 = sbr.rel (0) target = $region37
    $region36: #{tpu_custom_call.1} parent=1 // pred_region
      _
    $region37: #{tpu_custom_call.1} parent=1 // pred_fallthru
      _
    %v35 = vld [vmem:[%s0] sm:$0x3]
    %v36 = vld [vmem:[%s1] sm:$0xff]
    %v37 = vld [vmem:[%s1 + $0x8] sm:$0xff]
    %v38 = vld [vmem:[%s1 + $0x10] sm:$0xff]
    %v39 = vld [vmem:[%s1 + $0x18] sm:$0xff]
    %v40 = vld [vmem:[%s2] sm:$0xff]
    %v41 = vld [vmem:[%s2 + $0x8] sm:$0xff]
    %v42 = vld [vmem:[%s2 + $0x10] sm:$0xff]
    %v43 = vld [vmem:[%s2 + $0x18] sm:$0xff]
    %45 = vset.pattern.permute.xlu0 0
    %46 = vperm.xlu0 %45, %v36
    %v47 = vpop.permute.xlu0 %46
    %50 = vset.pattern.permute.xlu0 0
    %51 = vperm.xlu0 %50, %v37
    %v52 = vpop.permute.xlu0 %51
    %55 = vset.pattern.permute.xlu0 0
    %56 = vperm.xlu0 %55, %v38
    %v57 = vpop.permute.xlu0 %56
    %60 = vset.pattern.permute.xlu0 0
    %61 = vperm.xlu0 %60, %v39
    %v62 = vpop.permute.xlu0 %61
    %v64 = vlaneseq
    %v65 = vshrl.u32 %v64, 7
    %v66 = vsub.s32 0, %v65
    %v67 = vrot.slane %v35, %v66
    %v68 = vmul.f32 %v47, %v67
    %v69 = vmul.f32 %v52, %v67
    %v70 = vmul.f32 %v57, %v67
    %v71 = vmul.f32 %v62, %v67
    %72 = vset.pattern.permute.xlu0 1
    %73 = vperm.xlu0 %72, %v36
    %v74 = vpop.permute.xlu0 %73
    %76 = vset.pattern.permute.xlu0 1
    %77 = vperm.xlu0 %76, %v37
    %v78 = vpop.permute.xlu0 %77
    %80 = vset.pattern.permute.xlu0 1
    %81 = vperm.xlu0 %80, %v38
    %v82 = vpop.permute.xlu0 %81
    %84 = vset.pattern.permute.xlu0 1
    %85 = vperm.xlu0 %84, %v39
    %v86 = vpop.permute.xlu0 %85
    %v88 = vlaneseq
    %v89 = vshrl.u32 %v88, 7
    %v90 = vsub.s32 1, %v89
    %v91 = vrot.slane %v35, %v90
    %v92 = vmul.f32 %v74, %v91
    %v93 = vmul.f32 %v78, %v91
    %v94 = vmul.f32 %v82, %v91
    %v95 = vmul.f32 %v86, %v91
    %v96 = vadd.f32 %v68, %v92
    %v97 = vadd.f32 %v69, %v93
    %v98 = vadd.f32 %v70, %v94
    %v99 = vadd.f32 %v71, %v95
    %101 = vset.pattern.permute.xlu0 0
    %102 = vperm.xlu0 %101, %v40
    %v103 = vpop.permute.xlu0 %102
    %106 = vset.pattern.permute.xlu0 0
    %107 = vperm.xlu0 %106, %v41
    %v108 = vpop.permute.xlu0 %107
    %111 = vset.pattern.permute.xlu0 0
    %112 = vperm.xlu0 %111, %v42
    %v113 = vpop.permute.xlu0 %112
    %116 = vset.pattern.permute.xlu0 0
    %117 = vperm.xlu0 %116, %v43
    %v118 = vpop.permute.xlu0 %117
    %v120 = vadd.f32 %v96, %v103
    %v121 = vadd.f32 %v97, %v108
    %v122 = vadd.f32 %v98, %v113
    %v123 = vadd.f32 %v99, %v118
    %v124 = vtanh.pop %v120
    %v125 = vtanh.pop %v121
    %v126 = vtanh.pop %v122
    %v127 = vtanh.pop %v123
    %v128 = vld [vmem:[%s3] sm:$0xff]
    %v129 = vld [vmem:[%s3 + $0x8] sm:$0xff]
    %v130 = vld [vmem:[%s3 + $0x10] sm:$0xff]
    %v131 = vld [vmem:[%s3 + $0x18] sm:$0xff]
    %v132 = vld [vmem:[%s4] sm:$0xff]
    %v133 = vld [vmem:[%s4 + $0x8] sm:$0xff]
    %v134 = vld [vmem:[%s4 + $0x10] sm:$0xff]
    %v135 = vld [vmem:[%s4 + $0x18] sm:$0xff]
    %137 = vset.pattern.permute.xlu0 0
    %138 = vperm.xlu0 %137, %v132
    %v139 = vpop.permute.xlu0 %138
    %142 = vset.pattern.permute.xlu0 0
    %143 = vperm.xlu0 %142, %v133
    %v144 = vpop.permute.xlu0 %143
    %147 = vset.pattern.permute.xlu0 0
    %148 = vperm.xlu0 %147, %v134
    %v149 = vpop.permute.xlu0 %148
    %152 = vset.pattern.permute.xlu0 0
    %153 = vperm.xlu0 %152, %v135
    %v154 = vpop.permute.xlu0 %153
    %vm156 = vcmask 261120
    %v158 = vsel %vm156, %v128, 0
    %v161 = vsel %vm156, %v129, 0
    %v164 = vsel %vm156, %v130, 0
    %v167 = vsel %vm156, %v131, 0
    %169 = vmatprep.subr.mxu0 0.0
    %170 = vmatpush1.msra.mxu0 %v124
    %171 = vmatprep.subr.mxu0 0.0
    %172 = vmatpush1.msra.mxu0 %v125
    %173 = vmatprep.subr.mxu0 0.0
    %174 = vmatpush1.msra.mxu0 %v126
    %175 = vmatprep.subr.mxu0 0.0
    %176 = vmatpush1.msra.mxu0 %v127
    %177 = vmatprep.subr.mxu0 0.0
    %178 = vmatpush1.msra.mxu0 0.0
    %179 = vmatprep.subr.mxu0 0.0
    %180 = vmatpush1.msra.mxu0 0.0
    %181 = vmatprep.subr.mxu0 0.0
    %182 = vmatpush1.msra.mxu0 0.0
    %183 = vmatprep.subr.mxu0 0.0
    %184 = vmatpush1.msra.mxu0 0.0
    %185 = vmatprep.subr.mxu0 0.0
    %186 = vmatpush1.msra.mxu0 0.0
    %187 = vmatprep.subr.mxu0 0.0
    %188 = vmatpush1.msra.mxu0 0.0
    %189 = vmatprep.subr.mxu0 0.0
    %190 = vmatpush1.msra.mxu0 0.0
    %191 = vmatprep.subr.mxu0 0.0
    %192 = vmatpush1.msra.mxu0 0.0
    %193 = vmatprep.subr.mxu0 0.0
    %194 = vmatpush1.msra.mxu0 0.0
    %195 = vmatprep.subr.mxu0 0.0
    %196 = vmatpush1.msra.mxu0 0.0
    %197 = vmatprep.subr.mxu0 0.0
    %198 = vmatpush1.msra.mxu0 0.0
    %199 = vmatprep.subr.mxu0 0.0
    %200 = vmatpush1.msra.mxu0 0.0
    %201 = vmatprep.subr.mxu0 0.0
    %202 = vmatpush1.msra.mxu0 0.0
    %203 = vmatprep.subr.mxu0 0.0
    %204 = vmatpush1.msra.mxu0 0.0
    %205 = vmatprep.subr.mxu0 0.0
    %206 = vmatpush1.msra.mxu0 0.0
    %207 = vmatprep.subr.mxu0 0.0
    %208 = vmatpush1.msra.mxu0 0.0
    %209 = vmatprep.subr.mxu0 0.0
    %210 = vmatpush1.msra.mxu0 0.0
    %211 = vmatprep.subr.mxu0 0.0
    %212 = vmatpush1.msra.mxu0 0.0
    %213 = vmatprep.subr.mxu0 0.0
    %214 = vmatpush1.msra.mxu0 0.0
    %215 = vmatprep.subr.mxu0 0.0
    %216 = vmatpush1.msra.mxu0 0.0
    %217 = vmatprep.subr.mxu0 0.0
    %218 = vmatpush1.msra.mxu0 0.0
    %219 = vmatprep.subr.mxu0 0.0
    %220 = vmatpush1.msra.mxu0 0.0
    %221 = vmatprep.subr.mxu0 0.0
    %222 = vmatpush1.msra.mxu0 0.0
    %223 = vmatprep.subr.mxu0 0.0
    %224 = vmatpush1.msra.mxu0 0.0
    %225 = vmatprep.subr.mxu0 0.0
    %226 = vmatpush1.msra.mxu0 0.0
    %227 = vmatprep.subr.mxu0 0.0
    %228 = vmatpush1.msra.mxu0 0.0
    %229 = vmatprep.subr.mxu0 0.0
    %230 = vmatpush1.msra.mxu0 0.0
    %231 = vmatprep.subr.mxu0 0.0
    %232 = vmatpush1.msra.mxu0 0.0
    %233 = vmatprep.mubr.f32.mxu0 0.0
    %234 = vmatmul.mubr.f32.gmra.mrb[0].mxu0 %v158
    %v235 = vpop.f32.mrb[0].mxu0
    %v236 = vadd.f32 %v139, %v235
    %v237 = vpop.f32.mrb[0].mxu0
    %238 = vmatprep.mubr.f32.mxu0 0.0
    %239 = vmatmul.mubr.f32.gmra.mrb[0].mxu0 %v161
    %v240 = vpop.f32.mrb[0].mxu0
    %v241 = vadd.f32 %v144, %v240
    %v242 = vpop.f32.mrb[0].mxu0
    %243 = vmatprep.mubr.f32.mxu0 0.0
    %244 = vmatmul.mubr.f32.gmra.mrb[0].mxu0 %v164
    %v245 = vpop.f32.mrb[0].mxu0
    %v246 = vadd.f32 %v149, %v245
    %v247 = vpop.f32.mrb[0].mxu0
    %248 = vmatprep.mubr.f32.mxu0 0.0
    %249 = vmatmul.mubr.f32.gmra.mrb[0].mxu0 %v167
    %v250 = vpop.f32.mrb[0].mxu0
    %v251 = vadd.f32 %v154, %v250
    %v252 = vpop.f32.mrb[0].mxu0
    %253 = vdwg.mxu0
    %v254 = vtanh.pop %v236
    %v255 = vtanh.pop %v241
    %v256 = vtanh.pop %v246
    %v257 = vtanh.pop %v251
    %v258 = vld [vmem:[%s5] sm:$0xff]
    %v259 = vld [vmem:[%s5 + $0x8] sm:$0xff]
    %v260 = vld [vmem:[%s5 + $0x10] sm:$0xff]
    %v261 = vld [vmem:[%s5 + $0x18] sm:$0xff]
    %v262 = vld [vmem:[%s6] sm:$0xff]
    %v263 = vld [vmem:[%s6 + $0x8] sm:$0xff]
    %v264 = vld [vmem:[%s6 + $0x10] sm:$0xff]
    %v265 = vld [vmem:[%s6 + $0x18] sm:$0xff]
    %267 = vset.pattern.permute.xlu0 0
    %268 = vperm.xlu0 %267, %v262
    %v269 = vpop.permute.xlu0 %268
    %272 = vset.pattern.permute.xlu0 0
    %273 = vperm.xlu0 %272, %v263
    %v274 = vpop.permute.xlu0 %273
    %277 = vset.pattern.permute.xlu0 0
    %278 = vperm.xlu0 %277, %v264
    %v279 = vpop.permute.xlu0 %278
    %282 = vset.pattern.permute.xlu0 0
    %283 = vperm.xlu0 %282, %v265
    %v284 = vpop.permute.xlu0 %283
    %v287 = vsel %vm156, %v258, 0
    %v290 = vsel %vm156, %v259, 0
    %v293 = vsel %vm156, %v260, 0
    %v296 = vsel %vm156, %v261, 0
    %298 = vmatprep.subr.mxu0 0.0
    %299 = vmatpush1.msra.mxu0 %v254
    %300 = vmatprep.subr.mxu0 0.0
    %301 = vmatpush1.msra.mxu0 %v255
    %302 = vmatprep.subr.mxu0 0.0
    %303 = vmatpush1.msra.mxu0 %v256
    %304 = vmatprep.subr.mxu0 0.0
    %305 = vmatpush1.msra.mxu0 %v257
    %306 = vmatprep.subr.mxu0 0.0
    %307 = vmatpush1.msra.mxu0 0.0
    %308 = vmatprep.subr.mxu0 0.0
    %309 = vmatpush1.msra.mxu0 0.0
    %310 = vmatprep.subr.mxu0 0.0
    %311 = vmatpush1.msra.mxu0 0.0
    %312 = vmatprep.subr.mxu0 0.0
    %313 = vmatpush1.msra.mxu0 0.0
    %314 = vmatprep.subr.mxu0 0.0
    %315 = vmatpush1.msra.mxu0 0.0
    %316 = vmatprep.subr.mxu0 0.0
    %317 = vmatpush1.msra.mxu0 0.0
    %318 = vmatprep.subr.mxu0 0.0
    %319 = vmatpush1.msra.mxu0 0.0
    %320 = vmatprep.subr.mxu0 0.0
    %321 = vmatpush1.msra.mxu0 0.0
    %322 = vmatprep.subr.mxu0 0.0
    %323 = vmatpush1.msra.mxu0 0.0
    %324 = vmatprep.subr.mxu0 0.0
    %325 = vmatpush1.msra.mxu0 0.0
    %326 = vmatprep.subr.mxu0 0.0
    %327 = vmatpush1.msra.mxu0 0.0
    %328 = vmatprep.subr.mxu0 0.0
    %329 = vmatpush1.msra.mxu0 0.0
    %330 = vmatprep.subr.mxu0 0.0
    %331 = vmatpush1.msra.mxu0 0.0
    %332 = vmatprep.subr.mxu0 0.0
    %333 = vmatpush1.msra.mxu0 0.0
    %334 = vmatprep.subr.mxu0 0.0
    %335 = vmatpush1.msra.mxu0 0.0
    %336 = vmatprep.subr.mxu0 0.0
    %337 = vmatpush1.msra.mxu0 0.0
    %338 = vmatprep.subr.mxu0 0.0
    %339 = vmatpush1.msra.mxu0 0.0
    %340 = vmatprep.subr.mxu0 0.0
    %341 = vmatpush1.msra.mxu0 0.0
    %342 = vmatprep.subr.mxu0 0.0
    %343 = vmatpush1.msra.mxu0 0.0
    %344 = vmatprep.subr.mxu0 0.0
    %345 = vmatpush1.msra.mxu0 0.0
    %346 = vmatprep.subr.mxu0 0.0
    %347 = vmatpush1.msra.mxu0 0.0
    %348 = vmatprep.subr.mxu0 0.0
    %349 = vmatpush1.msra.mxu0 0.0
    %350 = vmatprep.subr.mxu0 0.0
    %351 = vmatpush1.msra.mxu0 0.0
    %352 = vmatprep.subr.mxu0 0.0
    %353 = vmatpush1.msra.mxu0 0.0
    %354 = vmatprep.subr.mxu0 0.0
    %355 = vmatpush1.msra.mxu0 0.0
    %356 = vmatprep.subr.mxu0 0.0
    %357 = vmatpush1.msra.mxu0 0.0
    %358 = vmatprep.subr.mxu0 0.0
    %359 = vmatpush1.msra.mxu0 0.0
    %360 = vmatprep.subr.mxu0 0.0
    %361 = vmatpush1.msra.mxu0 0.0
    %362 = vmatprep.mubr.f32.mxu0 0.0
    %363 = vmatmul.mubr.f32.gmra.mrb[0].mxu0 %v287
    %v364 = vpop.f32.mrb[0].mxu0
    %v365 = vadd.f32 %v269, %v364
    %v366 = vpop.f32.mrb[0].mxu0
    %367 = vmatprep.mubr.f32.mxu0 0.0
    %368 = vmatmul.mubr.f32.gmra.mrb[0].mxu0 %v290
    %v369 = vpop.f32.mrb[0].mxu0
    %v370 = vadd.f32 %v274, %v369
    %v371 = vpop.f32.mrb[0].mxu0
    %372 = vmatprep.mubr.f32.mxu0 0.0
    %373 = vmatmul.mubr.f32.gmra.mrb[0].mxu0 %v293
    %v374 = vpop.f32.mrb[0].mxu0
    %v375 = vadd.f32 %v279, %v374
    %v376 = vpop.f32.mrb[0].mxu0
    %377 = vmatprep.mubr.f32.mxu0 0.0
    %378 = vmatmul.mubr.f32.gmra.mrb[0].mxu0 %v296
    %v379 = vpop.f32.mrb[0].mxu0
    %v380 = vadd.f32 %v284, %v379
    %v381 = vpop.f32.mrb[0].mxu0
    %382 = vdwg.mxu0
    %v383 = vtanh.pop %v365
    %v384 = vtanh.pop %v370
    %v385 = vtanh.pop %v375
    %v386 = vtanh.pop %v380
    %v387 = vld [vmem:[%s7] sm:$0x1]
    %v388 = vld [vmem:[#allocation2] sm:$0x1]
    %390 = vset.pattern.permute.xlu0 0
    %391 = vperm.xlu0 %390, %v388
    %v392 = vpop.permute.xlu0 %391
    %v394 = vlaneseq
    %v395 = vshrl.u32 %v394, 7
    %v396 = vsub.s32 0, %v395
    %v397 = vrot.slane %v392, %v396
    %v399 = vsel %vm156, %v387, 0
    %401 = vmatprep.subr.mxu0 0.0
    %402 = vmatpush1.msra.mxu0 %v383
    %403 = vmatprep.subr.mxu0 0.0
    %404 = vmatpush1.msra.mxu0 %v384
    %405 = vmatprep.subr.mxu0 0.0
    %406 = vmatpush1.msra.mxu0 %v385
    %407 = vmatprep.subr.mxu0 0.0
    %408 = vmatpush1.msra.mxu0 %v386
    %409 = vmatprep.subr.mxu0 0.0
    %410 = vmatpush1.msra.mxu0 0.0
    %411 = vmatprep.subr.mxu0 0.0
    %412 = vmatpush1.msra.mxu0 0.0
    %413 = vmatprep.subr.mxu0 0.0
    %414 = vmatpush1.msra.mxu0 0.0
    %415 = vmatprep.subr.mxu0 0.0
    %416 = vmatpush1.msra.mxu0 0.0
    %417 = vmatprep.subr.mxu0 0.0
    %418 = vmatpush1.msra.mxu0 0.0
    %419 = vmatprep.subr.mxu0 0.0
    %420 = vmatpush1.msra.mxu0 0.0
    %421 = vmatprep.subr.mxu0 0.0
    %422 = vmatpush1.msra.mxu0 0.0
    %423 = vmatprep.subr.mxu0 0.0
    %424 = vmatpush1.msra.mxu0 0.0
    %425 = vmatprep.subr.mxu0 0.0
    %426 = vmatpush1.msra.mxu0 0.0
    %427 = vmatprep.subr.mxu0 0.0
    %428 = vmatpush1.msra.mxu0 0.0
    %429 = vmatprep.subr.mxu0 0.0
    %430 = vmatpush1.msra.mxu0 0.0
    %431 = vmatprep.subr.mxu0 0.0
    %432 = vmatpush1.msra.mxu0 0.0
    %433 = vmatprep.subr.mxu0 0.0
    %434 = vmatpush1.msra.mxu0 0.0
    %435 = vmatprep.subr.mxu0 0.0
    %436 = vmatpush1.msra.mxu0 0.0
    %437 = vmatprep.subr.mxu0 0.0
    %438 = vmatpush1.msra.mxu0 0.0
    %439 = vmatprep.subr.mxu0 0.0
    %440 = vmatpush1.msra.mxu0 0.0
    %441 = vmatprep.subr.mxu0 0.0
    %442 = vmatpush1.msra.mxu0 0.0
    %443 = vmatprep.subr.mxu0 0.0
    %444 = vmatpush1.msra.mxu0 0.0
    %445 = vmatprep.subr.mxu0 0.0
    %446 = vmatpush1.msra.mxu0 0.0
    %447 = vmatprep.subr.mxu0 0.0
    %448 = vmatpush1.msra.mxu0 0.0
    %449 = vmatprep.subr.mxu0 0.0
    %450 = vmatpush1.msra.mxu0 0.0
    %451 = vmatprep.subr.mxu0 0.0
    %452 = vmatpush1.msra.mxu0 0.0
    %453 = vmatprep.subr.mxu0 0.0
    %454 = vmatpush1.msra.mxu0 0.0
    %455 = vmatprep.subr.mxu0 0.0
    %456 = vmatpush1.msra.mxu0 0.0
    %457 = vmatprep.subr.mxu0 0.0
    %458 = vmatpush1.msra.mxu0 0.0
    %459 = vmatprep.subr.mxu0 0.0
    %460 = vmatpush1.msra.mxu0 0.0
    %461 = vmatprep.subr.mxu0 0.0
    %462 = vmatpush1.msra.mxu0 0.0
    %463 = vmatprep.subr.mxu0 0.0
    %464 = vmatpush1.msra.mxu0 0.0
    %465 = vmatprep.mubr.f32.mxu0 0.0
    %466 = vmatmul.mubr.f32.gmra.mrb[0].mxu0 %v399
    %v467 = vpop.f32.mrb[0].mxu0
    %v468 = vadd.f32 %v397, %v467
    %v469 = vpop.f32.mrb[0].mxu0
    %470 = vdwg.mxu0
    %471 = vst [vmem:[#allocation3] sm:$0x1] %v468
    // Predicated region
    $region38: #{tpu_custom_call.1} parent=1 // pred_check
      _
    $region39: #{tpu_custom_call.1} parent=1 // pred_check_branch
      %473 = sbr.rel (0) target = $region41
    $region40: #{tpu_custom_call.1} parent=1 // pred_region
      %s475 = ssub.s32 16, 16
      %476 = vsyncadd [#allocation4], %s475
      %s478 = sshll.u32 [#allocation3], 4
      %s479 = int_to_ptr.vmem [resolvable:$true] %s478
      %481 = dma.vmem_to_hbm [thread:$0]  %s479, 16, %s9, [#allocation4]
    $region41: #{tpu_custom_call.1} parent=1 // pred_fallthru
      _
    // Predicated region
    $region42: #{tpu_custom_call.1} parent=1 // pred_check
      _
    $region43: #{tpu_custom_call.1} parent=1 // pred_check_branch
      %483 = sbr.rel (0) target = $region45
    $region44: #{tpu_custom_call.1} parent=1 // pred_region
      %484 = dma.done [#allocation4], 16
    $region45: #{tpu_custom_call.1} parent=1 // pred_fallthru
      _
    %485 = vsyncpa [#allocation4], 1

</llo_original>
